<compile_context>
chip_gen: v5e
topology: v5e:2x2
jax: 0.10.0
libtpu: 0.0.40
codegen_flags: <defaults>
</compile_context>

<pallas_src>
import jax
import jax.numpy as jnp
from jax.experimental import pallas as pl
from jax.experimental.pallas import tpu as pltpu


# ----------------------------------------------------------------------------
# Kernel
# ----------------------------------------------------------------------------
def _square_kernel(x_ref, o_ref):
    x = x_ref[...]
    o_ref[...] = x * x  # x ** 2


# ----------------------------------------------------------------------------
# Tunables / planning helpers
# ----------------------------------------------------------------------------
# Inputs at/below this slab size are squared as one whole-array block.
_SINGLE_BLOCK_MAX_BYTES = 512 * 1024
# Preferred lane width for the flattened slab (multiple of 128).
_WIDE_LANES = 1024
# Minimum number of grid steps in the tiled path (pipelining overlap + work
# for both TensorCores on v7x).
_MIN_GRID_STEPS = 8


def _sublane_pack(itemsize: int) -> int:
    """Native sublane packing for the dtype (8 for 32-bit, 16 bf16, 32 int8)."""
    return max(8, 32 // max(1, int(itemsize)))


def _tile_budget_bytes() -> int:
    """Total double-buffered footprint target (~4x tile bytes), per generation."""
    try:
        cap = int(pltpu.get_tpu_info().vmem_capacity_bytes)
    except Exception:  # conservative fallback if the query is unavailable
        cap = 64 << 20
    if cap >= (96 << 20):   # v5e / v6e: 128 MiB VMEM -> ~8 MiB tiles
        return 32 << 20
    return 16 << 20         # v7x: 64 MiB VMEM -> ~4 MiB tiles


def _plan_tiles(n_elems: int, width: int, itemsize: int,
                single_block_max_bytes: int):
    """Return (padded_rows, tile_rows or None) for a flat array of n_elems."""
    sub = _sublane_pack(itemsize)
    rows = pl.cdiv(n_elems, width)
    nbytes = rows * width * itemsize

    if nbytes <= single_block_max_bytes:
        return rows, None  # single whole-array block

    row_bytes = width * itemsize
    budget = _tile_budget_bytes()
    # Largest sublane-aligned tile within the double-buffered budget.
    tile_rows = max(sub, (((budget // 4) // row_bytes) // sub) * sub)
    # Keep >= _MIN_GRID_STEPS grid steps so both v7x cores get work and the
    # pipeline actually overlaps prefetch / compute / writeback.
    cap = max(sub, (pl.cdiv(rows, _MIN_GRID_STEPS) // sub) * sub)
    tile_rows = min(tile_rows, cap)
    # Pad rows so the grid divides evenly: every store is an unmasked vst.
    padded_rows = pl.cdiv(rows, tile_rows) * tile_rows
    return padded_rows, tile_rows


# ----------------------------------------------------------------------------
# pallas_call wrappers
# ----------------------------------------------------------------------------
def square_2d(x: jax.Array, *, tile_rows: int | None = None) -> jax.Array:
    """Elementwise x**2 on a lane-dense 2-D slab via Pallas."""
    assert x.ndim == 2
    R, C = x.shape
    itemsize = jnp.dtype(x.dtype).itemsize
    nbytes = R * C * itemsize

    if tile_rows is None or tile_rows >= R:
        # Single whole-array block: zero grid-loop overhead for tiny inputs.
        vmem_limit = min(48 << 20, max(8 << 20, 2 * nbytes + (1 << 20)))
        return pl.pallas_call(
            _square_kernel,
            out_shape=jax.ShapeDtypeStruct((R, C), x.dtype),
            in_specs=[pl.BlockSpec((R, C), lambda: (0, 0))],
            out_specs=pl.BlockSpec((R, C), lambda: (0, 0)),
            compiler_params=pltpu.CompilerParams(
                vmem_limit_bytes=vmem_limit),
        )(x)

    assert R % tile_rows == 0, "caller must pad rows to a multiple of tile_rows"
    tile_bytes = tile_rows * C * itemsize
    # Double-buffered input + output => ~4x tile bytes, plus headroom.
    vmem_limit = min(48 << 20, max(8 << 20, 4 * tile_bytes + (2 << 20)))

    return pl.pallas_call(
        _square_kernel,
        out_shape=jax.ShapeDtypeStruct((R, C), x.dtype),
        grid=(R // tile_rows,),
        in_specs=[pl.BlockSpec((tile_rows, C), lambda i: (i, 0))],
        out_specs=pl.BlockSpec((tile_rows, C), lambda i: (i, 0)),
        compiler_params=pltpu.CompilerParams(
            # Single grid axis marked parallel: shards across the 2 TCs on v7x.
            dimension_semantics=("parallel",),
            vmem_limit_bytes=vmem_limit,
        ),
    )(x)


def my_module_forward(x, *,
                      single_block_max_bytes: int = _SINGLE_BLOCK_MAX_BYTES):
    """Mirror of MyModule.forward: returns x ** 2."""
    # Scalar path (matches the `x: int` signature in the spec).
    if isinstance(x, (int, float)) or jnp.ndim(x) == 0:
        return x * x

    xa = jnp.asarray(x)
    if xa.size == 0:
        return xa
    orig_shape = xa.shape
    n = xa.size
    itemsize = jnp.dtype(xa.dtype).itemsize

    # Flatten to a lane-dense slab: W is always a multiple of 128, so stores
    # are never masked no matter what the original last dim was.
    width = _WIDE_LANES if n >= _WIDE_LANES else 128
    rows, tile_rows = _plan_tiles(n, width, itemsize, single_block_max_bytes)

    flat = xa.reshape(-1)
    n_pad = rows * width
    if n_pad != n:
        flat = jnp.pad(flat, (0, n_pad - n))
    slab = flat.reshape(rows, width)

    out_slab = square_2d(slab, tile_rows=tile_rows)
    return out_slab.reshape(-1)[:n].reshape(orig_shape)
    # NOTE: integer dtypes wrap on overflow when squared (|x| > 46340 for
    # int32), matching PyTorch wraparound semantics.
    # TODO(synk): log.info('前向传播') logging side-effect has no kernel equivalent.


# ----------------------------------------------------------------------------
# Self-test
# ----------------------------------------------------------------------------
if __name__ == "__main__":
    key = jax.random.PRNGKey(0)

    # 1) Small 4-D float tensor (spec-like shape): single-block fast path.
    x = jax.random.normal(key, (2, 4, 16, 16), dtype=jnp.float32)
    out = jax.block_until_ready(my_module_forward(x))
    assert out.shape == x.shape and out.dtype == x.dtype
    assert bool(jnp.allclose(out, x * x))

    # 2) Force the tiled (parallel row grid, lane-dense 1024-wide) path,
    #    including row padding for an exact grid.
    xf = jax.random.normal(jax.random.PRNGKey(1), (512, 300), dtype=jnp.float32)
    out_t = jax.block_until_ready(my_module_forward(xf, single_block_max_bytes=0))
    assert out_t.shape == xf.shape
    assert bool(jnp.allclose(out_t, xf * xf))

    # 3) Integer dtype with a non-128-aligned last dim (gets re-laned to 1024).
    xi = jax.random.randint(jax.random.PRNGKey(2), (16, 250),
                            minval=-100, maxval=100, dtype=jnp.int32)
    out_i = jax.block_until_ready(my_module_forward(xi))
    assert out_i.shape == xi.shape and out_i.dtype == xi.dtype
    assert bool(jnp.all(out_i == xi * xi))

    # 4) 1-D input (narrow lane width path, W=128).
    xv = jax.random.normal(jax.random.PRNGKey(3), (1000,), dtype=jnp.float32)
    out_v = jax.block_until_ready(my_module_forward(xv))
    assert out_v.shape == xv.shape
    assert bool(jnp.allclose(out_v, xv * xv))

    # 5) Scalar path from the original signature (plain Python int semantics).
    assert int(my_module_forward(7)) == 49

    print("KERNEL_OK")
</pallas_src>

<mosaic_0001>
module attributes {stable_mosaic.version = 11 : i64} {
  func.func @_square_kernel(%arg0: memref<2x1024xf32, #tpu.memory_space<vmem>>, %arg1: memref<2x1024xf32, #tpu.memory_space<vmem>>) attributes {dimension_semantics = [], scalar_prefetch = 0 : i64, scratch_operands = 0 : i64, tpu.core_type = #tpu.core_type<tc>} {
    %c0 = arith.constant 0 : index
    %c0_0 = arith.constant 0 : index
    %0 = vector.load %arg0[%c0, %c0_0] : memref<2x1024xf32, #tpu.memory_space<vmem>>, vector<2x1024xf32>
    %1 = arith.mulf %0, %0 : vector<2x1024xf32>
    %c0_1 = arith.constant 0 : index
    %c0_2 = arith.constant 0 : index
    %2 = vector.load %arg1[%c0_1, %c0_2] : memref<2x1024xf32, #tpu.memory_space<vmem>>, vector<2x1024xf32>
    tpu.vector_store %arg1[%c0_1, %c0_2], %1 {strides = array<i32>} : memref<2x1024xf32, #tpu.memory_space<vmem>>, vector<2x1024xf32>,
    return
  }
}

</mosaic_0001>

<llo_original>
// kernel: tpu_custom_call.1
$region0: #{tpu_custom_call.1}
  #allocation0 [shape = 'u32[]', space=smem, size = 0x4, offset = 0x4, fixed_abs, tag = 'smem constant byte address 0x4 - core index']
  #allocation1 [shape = 'u32[72,128]{1,0:T(1,128)}', space=vmem, size = 0x9000, scoped, tag = 'internal scratch']
  %s0 = inlined_call_operand.hbm [shape: f32[2,1024], index: 0, kind: input, shape index: {}]
  %s1 = inlined_call_operand.hbm [shape: f32[2,1024], index: 1, kind: output, shape index: {}]
  %s2 = sld [smem:[#allocation0]]
  $region18: #{tpu_custom_call.1} parent=0
    _
  %s4 = ssub.s32 1, %s2
  %s5 = scalar_select 0, %s4, %s2
  $region1: #{tpu_custom_call.1} parent=0
    #allocation2 [shape = 'u8[8192]{0}', space=vmem, size = 0x2000, scoped, tag = 'input window, operand 0, single buffered']
    #allocation3 [shape = 's32[1]{0}', space=sflag, size = 0x4, scoped, tag = 'scoped memory for tpu_custom_call.1']
    #allocation4 [shape = 's32[1]{0}', space=sflag, size = 0x4, scoped, tag = 'scoped memory for tpu_custom_call.1']
    #allocation5 [shape = 'u8[8192]{0}', space=vmem, size = 0x2000, scoped, tag = 'output window, operand 0, single buffered']
    %6 = vsyncpa [#allocation3], 0
    %7 = vsyncpa [#allocation4], 0
    // Predicated region
    $region2: #{tpu_custom_call.1} parent=1 // pred_check
      _
    $region3: #{tpu_custom_call.1} parent=1 // pred_check_branch
      %9 = sbr.rel (0) target = $region5
    $region4: #{tpu_custom_call.1} parent=1 // pred_region
      %11 = vsyncadd [#allocation3], 0
      %s13 = sshll.u32 %s0, 4
      %s14 = int_to_ptr.hbm [resolvable:$true] %s13
      %s15 = sshll.u32 [#allocation2], 4
      %s16 = int_to_ptr.vmem [resolvable:$true] %s15
      %18 = dma.hbm_to_vmem [thread:$0]  %s14, 256, %s16, [#allocation3]
    $region5: #{tpu_custom_call.1} parent=1 // pred_fallthru
      _
    // Predicated region
    $region6: #{tpu_custom_call.1} parent=1 // pred_check
      _
    $region7: #{tpu_custom_call.1} parent=1 // pred_check_branch
      %20 = sbr.rel (0) target = $region9
    $region8: #{tpu_custom_call.1} parent=1 // pred_region
      %22 = dma.done [#allocation3], 256
    $region9: #{tpu_custom_call.1} parent=1 // pred_fallthru
      _
    %v23 = vld [vmem:[#allocation2] sm:$0xff]
    %v24 = vld [vmem:[#allocation2 + $0x8] sm:$0xff]
    %v25 = vmul.f32 %v23, %v23
    %v26 = vmul.f32 %v24, %v24
    %27 = vst [vmem:[#allocation5] sm:$0xff] %v25
    %28 = vst [vmem:[#allocation5 + $0x8] sm:$0xff] %v26
    // Predicated region
    $region10: #{tpu_custom_call.1} parent=1 // pred_check
      _
    $region11: #{tpu_custom_call.1} parent=1 // pred_check_branch
      %30 = sbr.rel (0) target = $region13
    $region12: #{tpu_custom_call.1} parent=1 // pred_region
      %32 = vsyncadd [#allocation4], 0
      %s34 = sshll.u32 [#allocation5], 4
      %s35 = int_to_ptr.vmem [resolvable:$true] %s34
      %s36 = sshll.u32 %s1, 4
      %s37 = int_to_ptr.hbm [resolvable:$true] %s36
      %39 = dma.vmem_to_hbm [thread:$0]  %s35, 256, %s37, [#allocation4]
    $region13: #{tpu_custom_call.1} parent=1 // pred_fallthru
      _
    // Predicated region
    $region14: #{tpu_custom_call.1} parent=1 // pred_check
      _
    $region15: #{tpu_custom_call.1} parent=1 // pred_check_branch
      %41 = sbr.rel (0) target = $region17
    $region16: #{tpu_custom_call.1} parent=1 // pred_region
      %43 = dma.done [#allocation4], 256
    $region17: #{tpu_custom_call.1} parent=1 // pred_fallthru
      _
    %44 = vsyncpa [#allocation3], 1
    %45 = vsyncpa [#allocation4], 1

</llo_original>
